<compile_context>
chip_gen: v7x
topology: tpu7x:2x2x1
jax: 0.10.0
libtpu: 0.0.40
codegen_flags: <defaults>
</compile_context>

<pallas_src>
import jax
import jax.numpy as jnp
import numpy as np
from jax.experimental import pallas as pl
from jax.experimental.pallas import tpu as pltpu


def _round_up(x, m):
    return ((x + m - 1) // m) * m


_NEG_BIG = -1.0e30  # bias for padded vocab columns (exp underflows to 0)


# ----------------------------------------------------------------------------
# Hardware introspection (best effort; conservative fallbacks).
# ----------------------------------------------------------------------------
def _vmem_budget_bytes():
    total = 64 * 1024 * 1024          # conservative default = v7x per-TC VMEM
    try:
        info = pltpu.get_tpu_info()
        total = int(getattr(info, "vmem_capacity_bytes", total)) or total
    except Exception:
        pass
    # Leave headroom for compiler-internal scratch: 48 MiB budget on a 64 MiB
    # part (v7x), 96 MiB on a 128 MiB part (v5e/v6e).
    return max(32 * 1024 * 1024, min(total - 16 * 1024 * 1024, (total * 3) // 4))


def _row_splits_hint():
    # v7x has 2 TensorCores per chip; when rows are plentiful, give each TC its
    # own row tile (the row grid axis is marked "parallel").
    try:
        if "v7" in jax.devices()[0].device_kind.lower():
            return 2
    except Exception:
        pass
    return 1


# ----------------------------------------------------------------------------
# Tile planning + one-time weight packing.
# ----------------------------------------------------------------------------
def plan_vocab_packing(d_model, vocab, *, max_tv=2048, vmem_budget=None):
    """Static (per-model) plan: padded D/V and the vocab tile width."""
    budget = vmem_budget if vmem_budget is not None else _vmem_budget_bytes()
    Dp = _round_up(d_model, 256)            # MXU K dim: multiple of 256 (2x256^2 MXU)
    tv = min(max_tv, _round_up(vocab, 128))
    # Keep the double-buffered W slab (+bias) under ~1/3 of the budget; the
    # rest goes to the resident activation block and the (tm, tv) logits temp.
    while tv > 128 and (2 * Dp * tv * 2 + 2 * tv * 4) > budget // 3:
        tv -= 128
    tv = max(tv, 128)
    Vp = _round_up(vocab, tv)
    return dict(D=d_model, V=vocab, Dp=Dp, tv=tv, Vp=Vp)


def pack_output_projection(w_out, b_out, plan):
    """Pre-pad/cast the output projection once (bf16 W, _NEG_BIG-padded bias)."""
    D, V, Dp, Vp = plan["D"], plan["V"], plan["Dp"], plan["Vp"]
    w_p = jnp.zeros((Dp, Vp), jnp.bfloat16).at[:D, :V].set(w_out.astype(jnp.bfloat16))
    b_p = jnp.full((1, Vp), _NEG_BIG, jnp.float32).at[0, :V].set(
        b_out.astype(jnp.float32))
    return w_p, b_p


def _plan_rows(R, plan, *, vmem_budget=None):
    """Per-call plan: row tile size / count sized to the VMEM budget."""
    budget = vmem_budget if vmem_budget is not None else _vmem_budget_bytes()
    Dp, tv = plan["Dp"], plan["tv"]
    w_bytes = 2 * Dp * tv * 2 + 2 * tv * 4            # double-buffered W slab + bias
    out_bytes = 2 * 8 * 128 * 4                       # lane-dense partial block
    per_row = 2 * Dp * 2 + tv * 4 + 3 * 4 + 4 * 4     # h (x2) + logits temp + scratch
    Rp8 = _round_up(max(R, 8), 8)

    avail = max(budget - w_bytes - out_bytes, per_row * 8)
    tm_cap = max(8, (avail // per_row) // 8 * 8)

    splits = _row_splits_hint()
    if splits > 1 and Rp8 >= splits * 512:
        tm_target = _round_up(-(-Rp8 // splits), 8)   # v7x: one row tile per TC
    else:
        tm_target = Rp8                               # resident row block -> W read once
    tm = min(tm_target, tm_cap)
    n_rt = -(-Rp8 // tm)
    Rp = n_rt * tm

    est = w_bytes + out_bytes + per_row * tm
    vmem_limit = int(max(32 * 1024 * 1024, min(budget, est * 2 + 4 * 1024 * 1024)))
    return dict(tm=tm, Rp=Rp, n_rt=n_rt, vmem_limit=vmem_limit)


# ----------------------------------------------------------------------------
# Pallas kernel: fused (h @ W + b) -> online logsumexp -> target pick -> masked NLL
# grid = (row_tiles, vocab_tiles); vocab axis streamed ("arbitrary"), rows "parallel".
# ----------------------------------------------------------------------------
def _lm_loss_kernel(h_ref, w_ref, b_ref, tgt_ref, mask_ref, out_ref,
                    m_scr, l_scr, p_scr):
    j = pl.program_id(1)
    nv = pl.num_programs(1)
    tm = h_ref.shape[0]
    tv = w_ref.shape[1]

    @pl.when(j == 0)
    def _init():
        m_scr[...] = jnp.full_like(m_scr, -jnp.inf)
        l_scr[...] = jnp.zeros_like(l_scr)
        p_scr[...] = jnp.zeros_like(p_scr)

    # bf16 x bf16 -> f32 accumulation on the MXU; logits tile is (tm, tv).
    logits = jnp.dot(h_ref[...], w_ref[...],
                     preferred_element_type=jnp.float32) + b_ref[...]

    # Online logsumexp over the vocab (lane) axis.
    # NOTE: padded vocab columns carry a _NEG_BIG bias; with Vp = round_up(V, tv)
    # they only ever share the *last* tile with real columns, so m_new stays
    # finite and exp() of the padded lanes underflows to exactly 0.
    m_prev = m_scr[...]                                              # (tm, 1)
    m_new = jnp.maximum(m_prev, jnp.max(logits, axis=-1, keepdims=True))
    l_scr[...] = (l_scr[...] * jnp.exp(m_prev - m_new)
                  + jnp.sum(jnp.exp(logits - m_new), axis=-1, keepdims=True))
    m_scr[...] = m_new

    # Direct target-logit pick: shift the target into tile-local lane
    # coordinates ((tm,1) op) and compare against a plain lane iota — avoids a
    # full (tm, tv) int32 add per grid step.
    tgt_local = tgt_ref[...] - j * tv                                # (tm, 1)
    lane = jax.lax.broadcasted_iota(jnp.int32, (tm, tv), 1)
    hit = lane == tgt_local                                          # (tm, tv)
    p_scr[...] += jnp.sum(jnp.where(hit, logits, 0.0), axis=-1, keepdims=True)

    @pl.when(j == nv - 1)
    def _finalize():
        mask = mask_ref[...]                                         # (tm, 1)
        # -log p(target) = logsumexp - target_logit
        nll = m_scr[...] + jnp.log(l_scr[...]) - p_scr[...]          # (tm, 1)
        num = jnp.sum(nll * mask)
        den = jnp.sum(mask)
        # Lane-dense partial block: [0,0,0] = num, [0,0,1] = den, rest zero.
        sub = jax.lax.broadcasted_iota(jnp.int32, (1, 8, 128), 1)
        ln = jax.lax.broadcasted_iota(jnp.int32, (1, 8, 128), 2)
        out_ref[...] = jnp.where((sub == 0) & (ln == 0), num,
                                 jnp.where((sub == 0) & (ln == 1), den, 0.0))


def lm_loss_pallas(h_flat, w_packed, b_packed, targets_flat, masks_flat, plan,
                   *, vmem_budget=None):
    """LanguageModelCriterion fused with the (pre-packed) output projection.

    h_flat:       (R, D) hidden states (R = batch * seq)
    w_packed:     (Dp, Vp) bf16 pre-packed output projection
    b_packed:     (1, Vp)  f32 bias (padded columns = _NEG_BIG)
    targets_flat: (R,)   int target ids   (labels[..., 1:] flattened)
    masks_flat:   (R,)   token masks      (masks[..., 1:] flattened)
    returns scalar loss = sum(-logprob[target] * mask) / sum(mask)
    """
    R, D = h_flat.shape
    Dp, tv, Vp = plan["Dp"], plan["tv"], plan["Vp"]
    rows = _plan_rows(R, plan, vmem_budget=vmem_budget)
    tm, Rp, n_rt = rows["tm"], rows["Rp"], rows["n_rt"]
    n_vt = Vp // tv

    # Only the (small) activation / target / mask tensors are padded per call.
    h_p = jnp.zeros((Rp, Dp), jnp.bfloat16).at[:R, :D].set(
        h_flat.astype(jnp.bfloat16))
    tgt_p = jnp.zeros((Rp, 1), jnp.int32).at[:R, 0].set(
        targets_flat.astype(jnp.int32))
    msk_p = jnp.zeros((Rp, 1), jnp.float32).at[:R, 0].set(
        masks_flat.astype(jnp.float32))

    parts = pl.pallas_call(
        _lm_loss_kernel,
        out_shape=jax.ShapeDtypeStruct((n_rt, 8, 128), jnp.float32),
        grid_spec=pltpu.PrefetchScalarGridSpec(
            num_scalar_prefetch=0,
            grid=(n_rt, n_vt),
            in_specs=[
                pl.BlockSpec((tm, Dp), lambda i, j: (i, 0)),   # hidden rows (resident)
                pl.BlockSpec((Dp, tv), lambda i, j: (0, j)),   # W vocab slab (streamed)
                pl.BlockSpec((1, tv), lambda i, j: (0, j)),    # bias slab
                pl.BlockSpec((tm, 1), lambda i, j: (i, 0)),    # targets
                pl.BlockSpec((tm, 1), lambda i, j: (i, 0)),    # masks
            ],
            out_specs=pl.BlockSpec((1, 8, 128), lambda i, j: (i, 0, 0)),
            scratch_shapes=[pltpu.VMEM((tm, 1), jnp.float32),   # running max
                            pltpu.VMEM((tm, 1), jnp.float32),   # running sumexp
                            pltpu.VMEM((tm, 1), jnp.float32)],  # picked logit
        ),
        compiler_params=pltpu.CompilerParams(
            dimension_semantics=("parallel", "arbitrary"),
            vmem_limit_bytes=rows["vmem_limit"],
        ),
        cost_estimate=pl.CostEstimate(
            flops=2 * Rp * Dp * Vp,
            transcendentals=Rp * Vp,
            bytes_accessed=(Rp * Dp * 2 + n_rt * Dp * Vp * 2 + n_rt * Vp * 4
                            + Rp * 8 + n_rt * 8 * 128 * 4),
        ),
    )(h_p, w_packed, b_packed, tgt_p, msk_p)

    num = jnp.sum(parts[:, 0, 0])
    den = jnp.sum(parts[:, 0, 1])
    # Matches torch LanguageModelCriterion semantics (den==0 -> NaN, intentional).
    return num / den


# ----------------------------------------------------------------------------
# Tiny deterministic stand-in for the captioning model (glue in plain JAX).
# ----------------------------------------------------------------------------
class TinyCaptionModel:
    def __init__(self, key, vocab=128, d_model=32):
        k1, k2, k3, k4 = jax.random.split(key, 4)
        self.vocab = vocab
        self.d_model = d_model
        self.embed = 0.02 * jax.random.normal(k1, (vocab, d_model), jnp.float32)
        self.w_fc = 0.02 * jax.random.normal(k2, (d_model, d_model), jnp.float32)
        self.w_att = 0.02 * jax.random.normal(k3, (d_model, d_model), jnp.float32)
        self.w_out = 0.02 * jax.random.normal(k4, (d_model, vocab), jnp.float32)
        self.b_out = jnp.zeros((vocab,), jnp.float32)
        # Pre-pack the output projection ONCE (bf16, padded) — no per-call
        # HBM pad/cast pass over the (D, V) weight.
        self.pack_plan = plan_vocab_packing(d_model, vocab)
        self.w_out_packed, self.b_out_packed = pack_output_projection(
            self.w_out, self.b_out, self.pack_plan)

    def hidden(self, fc_feats, att_feats, labels, att_masks):
        """Returns hidden states (N, T, D) for teacher-forced tokens labels[:, :-1]."""
        x = self.embed[labels[:, :-1]]                               # (N, T, D)
        ctx_fc = fc_feats @ self.w_fc                                # (N, D)
        am = att_masks[..., None]                                    # (N, L, 1)
        pooled = jnp.sum(att_feats * am, axis=1) / jnp.maximum(
            jnp.sum(am, axis=1), 1.0)                                # (N, D)
        ctx_att = pooled @ self.w_att                                # (N, D)
        return x + (ctx_fc + ctx_att)[:, None, :]                    # (N, T, D)


class Opt:
    label_smoothing = 0.0
    caption_model = "transformer"
    structure_loss_weight = 0.0
    structure_loss_type = "seqnll"


# ----------------------------------------------------------------------------
# LossWrapper forward (JAX/Pallas version).
# ----------------------------------------------------------------------------
class LossWrapper:
    def __init__(self, model, opt):
        self.opt = opt
        self.model = model
        # opt.label_smoothing == 0 -> LanguageModelCriterion (fused Pallas kernel)

    def forward(self, fc_feats, att_feats, labels, masks, att_masks,
                gts=None, gt_indices=None, sc_flag=False, struc_flag=False,
                vocab=None, test_masks=None, test_labels=None, batch_index=None):
        out = {}
        if struc_flag:
            # TODO(synk): structure losses need autoregressive sampling + CIDEr reward
            # (no clean Pallas equivalent); not implemented in this synthetic kernel.
            raise NotImplementedError("struc_flag branch not supported")
        elif not sc_flag:
            # loss = crit(model(fc, att, labels, att_masks), labels[...,1:], masks[...,1:])
            h = self.model.hidden(fc_feats, att_feats, labels, att_masks)   # (N, T, D)
            N, T, D = h.shape
            targets = labels[..., 1:].reshape(N * T)
            tok_mask = masks[..., 1:].reshape(N * T)
            loss = lm_loss_pallas(h.reshape(N * T, D),
                                  self.model.w_out_packed,
                                  self.model.b_out_packed,
                                  targets, tok_mask,
                                  self.model.pack_plan)
        else:
            # TODO(synk): self-critical branch requires greedy/sampled decoding and
            # get_self_critical_reward; not implemented.
            raise NotImplementedError("sc_flag branch not supported")
        out["loss"] = loss
        return out


# ----------------------------------------------------------------------------
# Pure-JAX reference for correctness checking (same bf16-in / f32-acc matmul).
# ----------------------------------------------------------------------------
def _reference_loss(model, fc_feats, att_feats, labels, masks, att_masks):
    h = model.hidden(fc_feats, att_feats, labels, att_masks)
    logits = jnp.dot(h.astype(jnp.bfloat16), model.w_out.astype(jnp.bfloat16),
                     preferred_element_type=jnp.float32) + model.b_out
    logprobs = jax.nn.log_softmax(logits, axis=-1)
    tgt = labels[..., 1:]
    m = masks[..., 1:].astype(jnp.float32)
    picked = jnp.take_along_axis(logprobs, tgt[..., None], axis=-1)[..., 0]
    return jnp.sum(-picked * m) / jnp.sum(m)


if __name__ == "__main__":
    key = jax.random.PRNGKey(0)
    N, L, D, V, Tp1 = 2, 16, 32, 128, 9            # batch, att-len, hidden, vocab, seq+1
    ks = jax.random.split(key, 6)

    fc_feats = jax.random.normal(ks[0], (N, D), jnp.float32)
    att_feats = jax.random.normal(ks[1], (N, L, D), jnp.float32)
    labels = jax.random.randint(ks[2], (N, Tp1), 1, V).astype(jnp.int32)
    labels = labels.at[:, 0].set(0)                 # BOS token = 0
    masks = jnp.ones((N, Tp1), jnp.float32).at[:, -2:].set(0.0)
    att_masks = jnp.ones((N, L), jnp.float32)

    model = TinyCaptionModel(ks[3], vocab=V, d_model=D)
    wrapper = LossWrapper(model, Opt())

    out = wrapper.forward(fc_feats, att_feats, labels, masks, att_masks,
                          gts=None, gt_indices=None, sc_flag=False, struc_flag=False)
    loss = jax.block_until_ready(out["loss"])

    ref = jax.block_until_ready(
        _reference_loss(model, fc_feats, att_feats, labels, masks, att_masks))
    np.testing.assert_allclose(np.asarray(loss), np.asarray(ref),
                               rtol=1e-4, atol=1e-4)

    print("KERNEL_OK")
</pallas_src>

<mosaic_0001>
module attributes {stable_mosaic.version = 11 : i64} {
  func.func @_lm_loss_kernel(%arg0: i32, %arg1: i32, %arg2: memref<16x256xbf16, #tpu.memory_space<vmem>>, %arg3: memref<256x128xbf16, #tpu.memory_space<vmem>>, %arg4: memref<1x128xf32, #tpu.memory_space<vmem>>, %arg5: memref<16x1xi32, #tpu.memory_space<vmem>>, %arg6: memref<16x1xf32, #tpu.memory_space<vmem>>, %arg7: memref<1x8x128xf32, #tpu.memory_space<vmem>>, %arg8: memref<16x1xf32, #tpu.memory_space<vmem>>, %arg9: memref<16x1xf32, #tpu.memory_space<vmem>>, %arg10: memref<16x1xf32, #tpu.memory_space<vmem>>) attributes {dimension_semantics = [#tpu.dimension_semantics<parallel>, #tpu.dimension_semantics<arbitrary>], iteration_bounds = array<i64: 1, 1>, scalar_prefetch = 0 : i64, scratch_operands = 3 : i64, tpu.core_type = #tpu.core_type<tc>, window_params = [{transform_indices = @transform_0, window_bounds = array<i64: 16, 256>}, {transform_indices = @transform_1, window_bounds = array<i64: 256, 128>}, {transform_indices = @transform_2, window_bounds = array<i64: 1, 128>}, {transform_indices = @transform_3, window_bounds = array<i64: 16, 1>}, {transform_indices = @transform_4, window_bounds = array<i64: 16, 1>}, {transform_indices = @transform_5, window_bounds = array<i64: 1, 8, 128>}]} {
    %c0_i32 = arith.constant 0 : i32
    %0 = arith.cmpi eq, %arg1, %c0_i32 : i32
    %1 = arith.extui %0 : i1 to i32
    %c0_i32_0 = arith.constant 0 : i32
    %2 = arith.cmpi ne, %1, %c0_i32_0 : i32
    scf.if %2 {
      %cst_26 = arith.constant 0xFF800000 : f32
      %42 = vector.broadcast %cst_26 : f32 to vector<16x1xf32>
      %c0_27 = arith.constant 0 : index
      %c0_28 = arith.constant 0 : index
      %43 = vector.load %arg8[%c0_27, %c0_28] : memref<16x1xf32, #tpu.memory_space<vmem>>, vector<16x1xf32>
      tpu.vector_store %arg8[%c0_27, %c0_28], %42 {strides = array<i32>} : memref<16x1xf32, #tpu.memory_space<vmem>>, vector<16x1xf32>,
      %cst_29 = arith.constant 0.000000e+00 : f32
      %44 = vector.broadcast %cst_29 : f32 to vector<16x1xf32>
      %c0_30 = arith.constant 0 : index
      %c0_31 = arith.constant 0 : index
      %45 = vector.load %arg9[%c0_30, %c0_31] : memref<16x1xf32, #tpu.memory_space<vmem>>, vector<16x1xf32>
      tpu.vector_store %arg9[%c0_30, %c0_31], %44 {strides = array<i32>} : memref<16x1xf32, #tpu.memory_space<vmem>>, vector<16x1xf32>,
      %cst_32 = arith.constant 0.000000e+00 : f32
      %46 = vector.broadcast %cst_32 : f32 to vector<16x1xf32>
      %c0_33 = arith.constant 0 : index
      %c0_34 = arith.constant 0 : index
      %47 = vector.load %arg10[%c0_33, %c0_34] : memref<16x1xf32, #tpu.memory_space<vmem>>, vector<16x1xf32>
      tpu.vector_store %arg10[%c0_33, %c0_34], %46 {strides = array<i32>} : memref<16x1xf32, #tpu.memory_space<vmem>>, vector<16x1xf32>,
    } else {
    }
    %c0 = arith.constant 0 : index
    %c0_1 = arith.constant 0 : index
    %3 = vector.load %arg2[%c0, %c0_1] : memref<16x256xbf16, #tpu.memory_space<vmem>>, vector<16x256xbf16>
    %c0_2 = arith.constant 0 : index
    %c0_3 = arith.constant 0 : index
    %4 = vector.load %arg3[%c0_2, %c0_3] : memref<256x128xbf16, #tpu.memory_space<vmem>>, vector<256x128xbf16>
    %cst = arith.constant dense<0.000000e+00> : vector<16x128xf32>
    %5 = tpu.matmul %3, %4, %cst {dimension_numbers = #tpu.dot_dimension_numbers<[1], [0], [0], [1], [0, 0, 1, 1], [], []>} : vector<16x256xbf16>, vector<256x128xbf16>, vector<16x128xf32> -> vector<16x128xf32>
    %c0_4 = arith.constant 0 : index
    %c0_5 = arith.constant 0 : index
    %6 = vector.load %arg4[%c0_4, %c0_5] : memref<1x128xf32, #tpu.memory_space<vmem>>, vector<1x128xf32>
    %7 = vector.broadcast %6 : vector<1x128xf32> to vector<16x128xf32>
    %8 = arith.addf %5, %7 : vector<16x128xf32>
    %c0_6 = arith.constant 0 : index
    %c0_7 = arith.constant 0 : index
    %9 = vector.load %arg8[%c0_6, %c0_7] : memref<16x1xf32, #tpu.memory_space<vmem>>, vector<16x1xf32>
    %cst_8 = arith.constant dense<0xFF800000> : vector<16xf32>
    %10 = vector.multi_reduction <maximumf>, %8, %cst_8 [1] : vector<16x128xf32> to vector<16xf32>
    %11 = vector.shape_cast %10 : vector<16xf32> to vector<16x1xf32>
    %12 = arith.maximumf %9, %11 : vector<16x1xf32>
    %c0_9 = arith.constant 0 : index
    %c0_10 = arith.constant 0 : index
    %13 = vector.load %arg9[%c0_9, %c0_10] : memref<16x1xf32, #tpu.memory_space<vmem>>, vector<16x1xf32>
    %14 = arith.subf %9, %12 : vector<16x1xf32>
    %15 = math.exp %14 : vector<16x1xf32>
    %16 = arith.mulf %13, %15 : vector<16x1xf32>
    %17 = vector.broadcast %12 : vector<16x1xf32> to vector<16x128xf32>
    %18 = arith.subf %8, %17 : vector<16x128xf32>
    %19 = math.exp %18 : vector<16x128xf32>
    %cst_11 = arith.constant dense<0.000000e+00> : vector<16xf32>
    %20 = vector.multi_reduction <add>, %19, %cst_11 [1] : vector<16x128xf32> to vector<16xf32>
    %21 = vector.shape_cast %20 : vector<16xf32> to vector<16x1xf32>
    %22 = arith.addf %16, %21 : vector<16x1xf32>
    %c0_12 = arith.constant 0 : index
    %c0_13 = arith.constant 0 : index
    %23 = vector.load %arg9[%c0_12, %c0_13] : memref<16x1xf32, #tpu.memory_space<vmem>>, vector<16x1xf32>
    tpu.vector_store %arg9[%c0_12, %c0_13], %22 {strides = array<i32>} : memref<16x1xf32, #tpu.memory_space<vmem>>, vector<16x1xf32>,
    %c0_14 = arith.constant 0 : index
    %c0_15 = arith.constant 0 : index
    %24 = vector.load %arg8[%c0_14, %c0_15] : memref<16x1xf32, #tpu.memory_space<vmem>>, vector<16x1xf32>
    tpu.vector_store %arg8[%c0_14, %c0_15], %12 {strides = array<i32>} : memref<16x1xf32, #tpu.memory_space<vmem>>, vector<16x1xf32>,
    %c0_16 = arith.constant 0 : index
    %c0_17 = arith.constant 0 : index
    %25 = vector.load %arg5[%c0_16, %c0_17] : memref<16x1xi32, #tpu.memory_space<vmem>>, vector<16x1xi32>
    %c128_i32 = arith.constant 128 : i32
    %26 = arith.muli %arg1, %c128_i32 : i32
    %27 = vector.broadcast %26 : i32 to vector<16x1xi32>
    %28 = arith.subi %25, %27 : vector<16x1xi32>
    %29 = tpu.iota {dimensions = array<i32: 1>} : vector<16x128xi32>
    %30 = vector.broadcast %28 : vector<16x1xi32> to vector<16x128xi32>
    %31 = arith.cmpi eq, %29, %30 : vector<16x128xi32>
    %c0_18 = arith.constant 0 : index
    %c0_19 = arith.constant 0 : index
    %32 = vector.load %arg10[%c0_18, %c0_19] : memref<16x1xf32, #tpu.memory_space<vmem>>, vector<16x1xf32>
    %cst_20 = arith.constant 0.000000e+00 : f32
    %33 = vector.broadcast %cst_20 : f32 to vector<16x128xf32>
    %34 = arith.select %31, %8, %33 : vector<16x128xi1>, vector<16x128xf32>
    %cst_21 = arith.constant dense<0.000000e+00> : vector<16xf32>
    %35 = vector.multi_reduction <add>, %34, %cst_21 [1] : vector<16x128xf32> to vector<16xf32>
    %36 = vector.shape_cast %35 : vector<16xf32> to vector<16x1xf32>
    %37 = arith.addf %32, %36 : vector<16x1xf32>
    %c0_22 = arith.constant 0 : index
    %c0_23 = arith.constant 0 : index
    %38 = vector.load %arg10[%c0_22, %c0_23] : memref<16x1xf32, #tpu.memory_space<vmem>>, vector<16x1xf32>
    tpu.vector_store %arg10[%c0_22, %c0_23], %37 {strides = array<i32>} : memref<16x1xf32, #tpu.memory_space<vmem>>, vector<16x1xf32>,
    %c0_i32_24 = arith.constant 0 : i32
    %39 = arith.cmpi eq, %arg1, %c0_i32_24 : i32
    %40 = arith.extui %39 : i1 to i32
    %c0_i32_25 = arith.constant 0 : i32
    %41 = arith.cmpi ne, %40, %c0_i32_25 : i32
    scf.if %41 {
      %c0_26 = arith.constant 0 : index
      %c0_27 = arith.constant 0 : index
      %42 = vector.load %arg6[%c0_26, %c0_27] : memref<16x1xf32, #tpu.memory_space<vmem>>, vector<16x1xf32>
      %c0_28 = arith.constant 0 : index
      %c0_29 = arith.constant 0 : index
      %43 = vector.load %arg8[%c0_28, %c0_29] : memref<16x1xf32, #tpu.memory_space<vmem>>, vector<16x1xf32>
      %c0_30 = arith.constant 0 : index
      %c0_31 = arith.constant 0 : index
      %44 = vector.load %arg9[%c0_30, %c0_31] : memref<16x1xf32, #tpu.memory_space<vmem>>, vector<16x1xf32>
      %45 = math.log %44 : vector<16x1xf32>
      %46 = arith.addf %43, %45 : vector<16x1xf32>
      %c0_32 = arith.constant 0 : index
      %c0_33 = arith.constant 0 : index
      %47 = vector.load %arg10[%c0_32, %c0_33] : memref<16x1xf32, #tpu.memory_space<vmem>>, vector<16x1xf32>
      %48 = arith.subf %46, %47 : vector<16x1xf32>
      %49 = arith.mulf %48, %42 : vector<16x1xf32>
      %50 = vector.shape_cast %49 : vector<16x1xf32> to vector<1x16x1xf32>
      %cst_34 = arith.constant dense<0.000000e+00> : vector<1xf32>
      %51 = vector.multi_reduction <add>, %50, %cst_34 [1, 2] : vector<1x16x1xf32> to vector<1xf32>
      %52 = vector.shape_cast %51 : vector<1xf32> to vector<1x1x1xf32>
      %53 = vector.extract %52[0, 0, 0] : f32 from vector<1x1x1xf32>
      %54 = vector.shape_cast %42 : vector<16x1xf32> to vector<1x16x1xf32>
      %cst_35 = arith.constant dense<0.000000e+00> : vector<1xf32>
      %55 = vector.multi_reduction <add>, %54, %cst_35 [1, 2] : vector<1x16x1xf32> to vector<1xf32>
      %56 = vector.shape_cast %55 : vector<1xf32> to vector<1x1x1xf32>
      %57 = vector.extract %56[0, 0, 0] : f32 from vector<1x1x1xf32>
      %58 = tpu.iota {dimensions = array<i32: 1>} : vector<1x8x128xi32>
      %59 = tpu.iota {dimensions = array<i32: 2>} : vector<1x8x128xi32>
      %c0_i32_36 = arith.constant 0 : i32
      %60 = vector.broadcast %c0_i32_36 : i32 to vector<1x8x128xi32>
      %61 = arith.cmpi eq, %58, %60 : vector<1x8x128xi32>
      %c0_i32_37 = arith.constant 0 : i32
      %62 = vector.broadcast %c0_i32_37 : i32 to vector<1x8x128xi32>
      %63 = arith.cmpi eq, %59, %62 : vector<1x8x128xi32>
      %64 = arith.andi %61, %63 : vector<1x8x128xi1>
      %c0_i32_38 = arith.constant 0 : i32
      %65 = vector.broadcast %c0_i32_38 : i32 to vector<1x8x128xi32>
      %66 = arith.cmpi eq, %58, %65 : vector<1x8x128xi32>
      %c1_i32 = arith.constant 1 : i32
      %67 = vector.broadcast %c1_i32 : i32 to vector<1x8x128xi32>
      %68 = arith.cmpi eq, %59, %67 : vector<1x8x128xi32>
      %69 = arith.andi %66, %68 : vector<1x8x128xi1>
      %cst_39 = arith.constant 0.000000e+00 : f32
      %70 = vector.broadcast %57 : f32 to vector<1x8x128xf32>
      %71 = vector.broadcast %cst_39 : f32 to vector<1x8x128xf32>
      %72 = arith.select %69, %70, %71 : vector<1x8x128xi1>, vector<1x8x128xf32>
      %73 = vector.broadcast %53 : f32 to vector<1x8x128xf32>
      %74 = arith.select %64, %73, %72 : vector<1x8x128xi1>, vector<1x8x128xf32>
      %c0_40 = arith.constant 0 : index
      %c0_41 = arith.constant 0 : index
      %c0_42 = arith.constant 0 : index
      %75 = vector.load %arg7[%c0_40, %c0_41, %c0_42] : memref<1x8x128xf32, #tpu.memory_space<vmem>>, vector<1x8x128xf32>
      tpu.vector_store %arg7[%c0_40, %c0_41, %c0_42], %74 {strides = array<i32>} : memref<1x8x128xf32, #tpu.memory_space<vmem>>, vector<1x8x128xf32>,
    } else {
    }
    return
  }
  func.func @transform_0(%arg0: i32, %arg1: i32) -> (i32, i32) {
    %c0_i32 = arith.constant 0 : i32
    %c0_i32_0 = arith.constant 0 : i32
    return %arg0, %c0_i32 : i32, i32
  }
  func.func @transform_1(%arg0: i32, %arg1: i32) -> (i32, i32) {
    %c0_i32 = arith.constant 0 : i32
    %c0_i32_0 = arith.constant 0 : i32
    return %c0_i32, %arg1 : i32, i32
  }
  func.func @transform_2(%arg0: i32, %arg1: i32) -> (i32, i32) {
    %c0_i32 = arith.constant 0 : i32
    %c0_i32_0 = arith.constant 0 : i32
    return %c0_i32, %arg1 : i32, i32
  }
  func.func @transform_3(%arg0: i32, %arg1: i32) -> (i32, i32) {
    %c0_i32 = arith.constant 0 : i32
    %c0_i32_0 = arith.constant 0 : i32
    return %arg0, %c0_i32 : i32, i32
  }
  func.func @transform_4(%arg0: i32, %arg1: i32) -> (i32, i32) {
    %c0_i32 = arith.constant 0 : i32
    %c0_i32_0 = arith.constant 0 : i32
    return %arg0, %c0_i32 : i32, i32
  }
  func.func @transform_5(%arg0: i32, %arg1: i32) -> (i32, i32, i32) {
    %c0_i32 = arith.constant 0 : i32
    %c0_i32_0 = arith.constant 0 : i32
    %c0_i32_1 = arith.constant 0 : i32
    return %arg0, %c0_i32, %c0_i32_0 : i32, i32, i32
  }
}

</mosaic_0001>

<llo_original>
// kernel: tpu_custom_call.1
$region0: #{tpu_custom_call.1}
  #allocation0 [shape = 'u32[]', space=smem, size = 0x4, offset = 0x4, fixed_abs, tag = 'smem constant byte address 0x4 - core index']
  #allocation1 [shape = 'u32[144,128]{1,0:T(1,128)}', space=vmem, size = 0x12000, scoped, tag = 'internal scratch']
  #allocation2 [shape = 'f32[16,1]{1,0:T(8,128)}', space=vmem, size = 0x2000, scoped, tag = 'scratch operand']
  #allocation3 [shape = 'f32[16,1]{1,0:T(8,128)}', space=vmem, size = 0x2000, scoped, tag = 'scratch operand']
  #allocation4 [shape = 'f32[16,1]{1,0:T(8,128)}', space=vmem, size = 0x2000, scoped, tag = 'scratch operand']
  %s0 = inlined_call_operand.vmem [shape: bf16[16,256], index: 0, kind: input, shape index: {}]
  %s1 = inlined_call_operand.hbm [shape: bf16[256,128], index: 1, kind: input, shape index: {}]
  %s2 = inlined_call_operand.vmem [shape: f32[1,128], index: 2, kind: input, shape index: {}]
  %s3 = inlined_call_operand.vmem [shape: s32[16,1], index: 3, kind: input, shape index: {}]
  %s4 = inlined_call_operand.vmem [shape: f32[16,1], index: 4, kind: input, shape index: {}]
  %s5 = inlined_call_operand.hbm [shape: f32[1,8,128], index: 5, kind: output, shape index: {}]
  %s6 = sld [smem:[#allocation0]]
  $region42: #{tpu_custom_call.1} parent=0
    _
  %s8 = ssub.s32 1, %s6
  %s9 = scalar_select 0, %s8, %s6
  $region1: #{tpu_custom_call.1} parent=0
    #allocation5 [shape = 'u8[65536]{0}', space=vmem, size = 0x10000, scoped, tag = 'input window, operand 1, single buffered']
    #allocation6 [shape = 's32[1]{0}', space=sflag, size = 0x4, scoped, tag = 'scoped memory for tpu_custom_call.1']
    #allocation7 [shape = 's32[1]{0}', space=sflag, size = 0x4, scoped, tag = 'scoped memory for tpu_custom_call.1']
    #allocation8 [shape = 'u8[4096]{0}', space=vmem, size = 0x1000, scoped, tag = 'output window, operand 0, single buffered']
    %10 = vsyncpa [#allocation6], 0
    %11 = vsyncpa [#allocation7], 0
    // Predicated region
    $region2: #{tpu_custom_call.1} parent=1 // pred_check
      _
    $region3: #{tpu_custom_call.1} parent=1 // pred_check_branch
      %13 = sbr.rel (0) target = $region5
    $region4: #{tpu_custom_call.1} parent=1 // pred_region
      _
    $region5: #{tpu_custom_call.1} parent=1 // pred_fallthru
      _
    // Predicated region
    $region6: #{tpu_custom_call.1} parent=1 // pred_check
      _
    $region7: #{tpu_custom_call.1} parent=1 // pred_check_branch
      %15 = sbr.rel (0) target = $region9
    $region8: #{tpu_custom_call.1} parent=1 // pred_region
      %s17 = ssub.s32 2048, 2048
      %18 = vsyncadd [#allocation6], %s17
      %s19 = sshll.u32 [#allocation5], 4
      %s20 = int_to_ptr.vmem [resolvable:$true] %s19
      %25 = dma.hbm_to_vmem [thread:$0]  %s1, 2048, %s20, [#allocation6], 64, 64, 4
    $region9: #{tpu_custom_call.1} parent=1 // pred_fallthru
      _
    // Predicated region
    $region10: #{tpu_custom_call.1} parent=1 // pred_check
      _
    $region11: #{tpu_custom_call.1} parent=1 // pred_check_branch
      %27 = sbr.rel (0) target = $region13
    $region12: #{tpu_custom_call.1} parent=1 // pred_region
      _
    $region13: #{tpu_custom_call.1} parent=1 // pred_fallthru
      _
    // Predicated region
    $region14: #{tpu_custom_call.1} parent=1 // pred_check
      _
    $region15: #{tpu_custom_call.1} parent=1 // pred_check_branch
      %29 = sbr.rel (0) target = $region17
    $region16: #{tpu_custom_call.1} parent=1 // pred_region
      _
    $region17: #{tpu_custom_call.1} parent=1 // pred_fallthru
      _
    // Predicated region
    $region18: #{tpu_custom_call.1} parent=1 // pred_check
      _
    $region19: #{tpu_custom_call.1} parent=1 // pred_check_branch
      %31 = sbr.rel (0) target = $region21
    $region20: #{tpu_custom_call.1} parent=1 // pred_region
      _
    $region21: #{tpu_custom_call.1} parent=1 // pred_fallthru
      _
    // Predicated region
    $region22: #{tpu_custom_call.1} parent=1 // pred_check
      _
    $region23: #{tpu_custom_call.1} parent=1 // pred_check_branch
      %33 = sbr.rel (0) target = $region25
    $region24: #{tpu_custom_call.1} parent=1 // pred_region
      %34 = dma.done [#allocation6], 2048
    $region25: #{tpu_custom_call.1} parent=1 // pred_fallthru
      _
    %p36 = scmp.eq.s32.totalorder 0, 0
    // Predicated region
    $region26: #{tpu_custom_call.1} parent=1 // pred_check
      %p37 = pneg %p36
    $region27: #{tpu_custom_call.1} parent=1 // pred_check_branch
      %39 = sbr.rel (%p37) target = $region29
    $region28: #{tpu_custom_call.1} parent=1 // pred_region
      %vm40 = vcmask 7168
      %41 = vst.msk [vmem:[#allocation2] sm:$0xff] %vm40, -inf
      %42 = vst.msk [vmem:[#allocation2 + $0x8] sm:$0xff] %vm40, -inf
      %43 = vst.msk [vmem:[#allocation3] sm:$0xff] %vm40, 0.0
      %44 = vst.msk [vmem:[#allocation3 + $0x8] sm:$0xff] %vm40, 0.0
      %45 = vst.msk [vmem:[#allocation4] sm:$0xff] %vm40, 0.0
      %46 = vst.msk [vmem:[#allocation4 + $0x8] sm:$0xff] %vm40, 0.0
    $region29: #{tpu_custom_call.1} parent=1 // pred_fallthru
      _
    %v47 = vld [vmem:[%s0] sm:$0xff]
    %v48 = vld [vmem:[%s0 + $0x8] sm:$0xff]
    %v49 = vld [vmem:[#allocation5] sm:$0xf]
    %v50 = vld [vmem:[#allocation5 + $0x4] sm:$0xf]
    %v51 = vld [vmem:[#allocation5 + $0x8] sm:$0xf]
    %v52 = vld [vmem:[#allocation5 + $0xc] sm:$0xf]
    %v53 = vld [vmem:[#allocation5 + $0x10] sm:$0xf]
    %v54 = vld [vmem:[#allocation5 + $0x14] sm:$0xf]
    %v55 = vld [vmem:[#allocation5 + $0x18] sm:$0xf]
    %v56 = vld [vmem:[#allocation5 + $0x1c] sm:$0xf]
    %v57 = vld [vmem:[#allocation5 + $0x20] sm:$0xf]
    %v58 = vld [vmem:[#allocation5 + $0x24] sm:$0xf]
    %v59 = vld [vmem:[#allocation5 + $0x28] sm:$0xf]
    %v60 = vld [vmem:[#allocation5 + $0x2c] sm:$0xf]
    %v61 = vld [vmem:[#allocation5 + $0x30] sm:$0xf]
    %v62 = vld [vmem:[#allocation5 + $0x34] sm:$0xf]
    %v63 = vld [vmem:[#allocation5 + $0x38] sm:$0xf]
    %v64 = vld [vmem:[#allocation5 + $0x3c] sm:$0xf]
    %v65 = vld [vmem:[#allocation5 + $0x40] sm:$0xf]
    %v66 = vld [vmem:[#allocation5 + $0x44] sm:$0xf]
    %v67 = vld [vmem:[#allocation5 + $0x48] sm:$0xf]
    %v68 = vld [vmem:[#allocation5 + $0x4c] sm:$0xf]
    %v69 = vld [vmem:[#allocation5 + $0x50] sm:$0xf]
    %v70 = vld [vmem:[#allocation5 + $0x54] sm:$0xf]
    %v71 = vld [vmem:[#allocation5 + $0x58] sm:$0xf]
    %v72 = vld [vmem:[#allocation5 + $0x5c] sm:$0xf]
    %v73 = vld [vmem:[#allocation5 + $0x60] sm:$0xf]
    %v74 = vld [vmem:[#allocation5 + $0x64] sm:$0xf]
    %v75 = vld [vmem:[#allocation5 + $0x68] sm:$0xf]
    %v76 = vld [vmem:[#allocation5 + $0x6c] sm:$0xf]
    %v77 = vld [vmem:[#allocation5 + $0x70] sm:$0xf]
    %v78 = vld [vmem:[#allocation5 + $0x74] sm:$0xf]
    %v79 = vld [vmem:[#allocation5 + $0x78] sm:$0xf]
    %v80 = vld [vmem:[#allocation5 + $0x7c] sm:$0xf]
    %v81 = vld [vmem:[%s2] sm:$0x1]
    %v83 = vlaneseq
    %v84 = vshrl.u32 %v83, 7
    %v85 = vsub.s32 0, %v84
    %v86 = vrot.slane %v81, %v85
    %v90 = vunpack.c.l.b16 %v47
    %v91 = vunpack.c.h.b16 %v47
    %v92 = vunpack.c.l.b16 %v48
    %v93 = vunpack.c.h.b16 %v48
    %v94 = vpack.c.b16 %v92, %v90
    %v95 = vpack.c.b16 %v93, %v91
    %v130 = vunpack.c.l.b16 %v49
    %v131 = vunpack.c.l.b16 %v50
    %v132 = vunpack.c.l.b16 %v51
    %v133 = vunpack.c.l.b16 %v52
    %v134 = vunpack.c.l.b16 %v53
    %v135 = vunpack.c.l.b16 %v54
    %v136 = vunpack.c.l.b16 %v55
    %v137 = vunpack.c.l.b16 %v56
    %v138 = vunpack.c.l.b16 %v57
    %v139 = vunpack.c.l.b16 %v58
    %v140 = vunpack.c.l.b16 %v59
    %v141 = vunpack.c.l.b16 %v60
    %v142 = vunpack.c.l.b16 %v61
    %v143 = vunpack.c.l.b16 %v62
    %v144 = vunpack.c.l.b16 %v63
    %v145 = vunpack.c.l.b16 %v64
    %v146 = vunpack.c.l.b16 %v65
    %v147 = vunpack.c.l.b16 %v66
    %v148 = vunpack.c.l.b16 %v67
    %v149 = vunpack.c.l.b16 %v68
    %v150 = vunpack.c.l.b16 %v69
    %v151 = vunpack.c.l.b16 %v70
    %v152 = vunpack.c.l.b16 %v71
    %v153 = vunpack.c.l.b16 %v72
    %v154 = vunpack.c.l.b16 %v73
    %v155 = vunpack.c.l.b16 %v74
    %v156 = vunpack.c.l.b16 %v75
    %v157 = vunpack.c.l.b16 %v76
    %v158 = vunpack.c.l.b16 %v77
    %v159 = vunpack.c.l.b16 %v78
    %v160 = vunpack.c.l.b16 %v79
    %v161 = vunpack.c.l.b16 %v80
    %v162 = vpack.c.b16 %v131, %v130
    %v163 = vpack.c.b16 %v133, %v132
    %v164 = vpack.c.b16 %v135, %v134
    %v165 = vpack.c.b16 %v137, %v136
    %v166 = vpack.c.b16 %v139, %v138
    %v167 = vpack.c.b16 %v141, %v140
    %v168 = vpack.c.b16 %v143, %v142
    %v169 = vpack.c.b16 %v145, %v144
    %v170 = vpack.c.b16 %v147, %v146
    %v171 = vpack.c.b16 %v149, %v148
    %v172 = vpack.c.b16 %v151, %v150
    %v173 = vpack.c.b16 %v153, %v152
    %v174 = vpack.c.b16 %v155, %v154
    %v175 = vpack.c.b16 %v157, %v156
    %v176 = vpack.c.b16 %v159, %v158
    %v177 = vpack.c.b16 %v161, %v160
    %194 = vmatprep.subr.bf16.mxu0 0
    %195 = vmatpush1.bf16.msra.mxu0 %v162
    %196 = vmatprep.subr.bf16.mxu0 0
    %197 = vmatpush1.bf16.msra.mxu0 %v163
    %198 = vmatprep.subr.bf16.mxu0 0
    %199 = vmatpush1.bf16.msra.mxu0 %v164
    %200 = vmatprep.subr.bf16.mxu0 0
    %201 = vmatpush1.bf16.msra.mxu0 %v165
    %202 = vmatprep.subr.bf16.mxu0 0
    %203 = vmatpush1.bf16.msra.mxu0 %v166
    %204 = vmatprep.subr.bf16.mxu0 0
    %205 = vmatpush1.bf16.msra.mxu0 %v167
    %206 = vmatprep.subr.bf16.mxu0 0
    %207 = vmatpush1.bf16.msra.mxu0 %v168
    %208 = vmatprep.subr.bf16.mxu0 0
    %209 = vmatpush1.bf16.msra.mxu0 %v169
    %210 = vmatprep.subr.bf16.mxu0 0
    %211 = vmatpush1.bf16.msra.mxu0 %v170
    %212 = vmatprep.subr.bf16.mxu0 0
    %213 = vmatpush1.bf16.msra.mxu0 %v171
    %214 = vmatprep.subr.bf16.mxu0 0
    %215 = vmatpush1.bf16.msra.mxu0 %v172
    %216 = vmatprep.subr.bf16.mxu0 0
    %217 = vmatpush1.bf16.msra.mxu0 %v173
    %218 = vmatprep.subr.bf16.mxu0 0
    %219 = vmatpush1.bf16.msra.mxu0 %v174
    %220 = vmatprep.subr.bf16.mxu0 0
    %221 = vmatpush1.bf16.msra.mxu0 %v175
    %222 = vmatprep.subr.bf16.mxu0 0
    %223 = vmatpush1.bf16.msra.mxu0 %v176
    %224 = vmatprep.subr.bf16.mxu0 0
    %225 = vmatpush1.bf16.msra.mxu0 %v177
    %226 = vmatprep.mubr.bf16.mxu0 %v95
    %227 = vmatmul.mubr.bf16.gmra.mrb[0].mxu0 %v94
    %v228 = vpop.f32.mrb[0].mxu0
    %v229 = vadd.f32 %v86, %v228
    %v230 = vpop.f32.mrb[0].mxu0
    %v231 = vpop.f32.mrb[0].mxu0
    %v232 = vadd.f32 %v86, %v231
    %v233 = vpop.f32.mrb[0].mxu0
    %234 = vdwg.mxu0
    %v235 = vld [vmem:[#allocation2] sm:$0xff]
    %v236 = vld [vmem:[#allocation2 + $0x8] sm:$0xff]
    %237 = vmax.xlane.f32.xlu0 %v229
    %v238 = vpop.xlane.xlu0 %237
    %239 = vmax.xlane.f32.xlu0 %v232
    %v240 = vpop.xlane.xlu0 %239
    %v241 = vmax.f32 %v235, %v238
    %v242 = vmax.f32 %v236, %v240
    %v243 = vld [vmem:[#allocation3] sm:$0xff]
    %v244 = vld [vmem:[#allocation3 + $0x8] sm:$0xff]
    %v245 = vsub.f32 %v235, %v241
    %v246 = vsub.f32 %v236, %v242
    %v247 = vmul.f32 %v245, 1.442695
    %v248 = vpow.pop %v247
    %v249 = vmul.f32 %v246, 1.442695
    %v250 = vpow.pop %v249
    %v251 = vmul.f32 %v243, %v248
    %v252 = vmul.f32 %v244, %v250
    %254 = vset.pattern.permute.xlu0 0
    %255 = vperm.xlu0 %254, %v241
    %v256 = vpop.permute.xlu0 %255
    %259 = vset.pattern.permute.xlu0 0
    %260 = vperm.xlu0 %259, %v242
    %v261 = vpop.permute.xlu0 %260
    %v263 = vsub.f32 %v229, %v256
    %v264 = vsub.f32 %v232, %v261
    %v265 = vmul.f32 %v263, 1.442695
    %v266 = vpow.pop %v265
    %v267 = vmul.f32 %v264, 1.442695
    %v268 = vpow.pop %v267
    %269 = vadd.xlane.f32.xlu0 %v266
    %v270 = vpop.xlane.xlu0 %269
    %271 = vadd.xlane.f32.xlu0 %v268
    %v272 = vpop.xlane.xlu0 %271
    %v273 = vadd.f32 %v251, %v270
    %v274 = vadd.f32 %v252, %v272
    %vm275 = vcmask 7168
    %276 = vst.msk [vmem:[#allocation3] sm:$0xff] %vm275, %v273
    %277 = vst.msk [vmem:[#allocation3 + $0x8] sm:$0xff] %vm275, %v274
    %278 = vst.msk [vmem:[#allocation2] sm:$0xff] %vm275, %v241
    %279 = vst.msk [vmem:[#allocation2 + $0x8] sm:$0xff] %vm275, %v242
    %v280 = vld [vmem:[%s3] sm:$0xff]
    %v281 = vld [vmem:[%s3 + $0x8] sm:$0xff]
    %s282 = smul.u32 0, 128
    %v283 = vstv %s282
    %v284 = vsub.s32 %v280, %v283
    %v285 = vsub.s32 %v281, %v283
    %v286 = vlaneseq
    %v287 = vand.u32 %v286, 127
    %288 = vset.pattern.permute.xlu0 0
    %289 = vperm.xlu0 %288, %v284
    %v290 = vpop.permute.xlu0 %289
    %291 = vset.pattern.permute.xlu0 0
    %292 = vperm.xlu0 %291, %v285
    %v293 = vpop.permute.xlu0 %292
    %vm294 = vcmp.eq.s32.totalorder %v287, %v290
    %vm295 = vcmp.eq.s32.totalorder %v287, %v293
    %v296 = vld [vmem:[#allocation4] sm:$0xff]
    %v297 = vld [vmem:[#allocation4 + $0x8] sm:$0xff]
    %v298 = vsel %vm294, %v229, 0.0
    %v299 = vsel %vm295, %v232, 0.0
    %300 = vadd.xlane.f32.xlu0 %v298
    %v301 = vpop.xlane.xlu0 %300
    %302 = vadd.xlane.f32.xlu0 %v299
    %v303 = vpop.xlane.xlu0 %302
    %v304 = vadd.f32 %v296, %v301
    %v305 = vadd.f32 %v297, %v303
    %306 = vst.msk [vmem:[#allocation4] sm:$0xff] %vm275, %v304
    %307 = vst.msk [vmem:[#allocation4 + $0x8] sm:$0xff] %vm275, %v305
    // Predicated region
    $region30: #{tpu_custom_call.1} parent=1 // pred_check
      %p308 = pneg %p36
    $region31: #{tpu_custom_call.1} parent=1 // pred_check_branch
      %310 = sbr.rel (%p308) target = $region33
    $region32: #{tpu_custom_call.1} parent=1 // pred_region
      %v311 = vld [vmem:[%s4] sm:$0xff]
      %v312 = vld [vmem:[%s4 + $0x8] sm:$0xff]
      %v313 = vld [vmem:[#allocation2] sm:$0xff]
      %v314 = vld [vmem:[#allocation2 + $0x8] sm:$0xff]
      %v315 = vld [vmem:[#allocation3] sm:$0xff]
      %v316 = vld [vmem:[#allocation3 + $0x8] sm:$0xff]
      %v317 = vlog2.pop %v315
      %v318 = vmul.f32 %v317, 0.6931472
      %v319 = vlog2.pop %v316
      %v320 = vmul.f32 %v319, 0.6931472
      %v321 = vadd.f32 %v313, %v318
      %v322 = vadd.f32 %v314, %v320
      %v323 = vld [vmem:[#allocation4] sm:$0xff]
      %v324 = vld [vmem:[#allocation4 + $0x8] sm:$0xff]
      %v325 = vsub.f32 %v321, %v323
      %v326 = vsub.f32 %v322, %v324
      %v327 = vmul.f32 %v325, %v311
      %v328 = vmul.f32 %v326, %v312
      %v329 = vsel %vm275, %v327, 0.0
      %v330 = vsel %vm275, %v328, 0.0
      %v331 = vadd.f32 %v329, %v330
      %332 = vadd.xlane.f32.xlu0 %v331
      %v333 = vpop.xlane.xlu0 %332
      %v334 = vrot.slane %v333, 4
      %v335 = vadd.f32 %v333, %v334
      %v336 = vrot.slane %v335, 2
      %v337 = vadd.f32 %v335, %v336
      %v338 = vrot.slane %v337, 1
      %v339 = vadd.f32 %v337, %v338
      %s340 = vtos %v339
      %v341 = vsel %vm275, %v311, 0.0
      %v342 = vsel %vm275, %v312, 0.0
      %v343 = vadd.f32 %v341, %v342
      %344 = vadd.xlane.f32.xlu0 %v343
      %v345 = vpop.xlane.xlu0 %344
      %v346 = vrot.slane %v345, 4
      %v347 = vadd.f32 %v345, %v346
      %v348 = vrot.slane %v347, 2
      %v349 = vadd.f32 %v347, %v348
      %v350 = vrot.slane %v349, 1
      %v351 = vadd.f32 %v349, %v350
      %s352 = vtos %v351
      %v353 = vlaneseq
      %v354 = vshrl.u32 %v353, 7
      %vm355 = vcmp.eq.s32.totalorder %v354, 0
      %vm356 = vcmp.eq.s32.totalorder %v287, 0
      %vm357 = vmand %vm355, %vm356
      %vm358 = vcmp.eq.s32.totalorder %v287, 1
      %vm359 = vmand %vm355, %vm358
      %v360 = vstv %s352
      %v361 = vsel %vm359, %v360, 0.0
      %v362 = vstv %s340
      %v363 = vsel %vm357, %v362, %v361
      %364 = vst [vmem:[#allocation8] sm:$0xff] %v363
    $region33: #{tpu_custom_call.1} parent=1 // pred_fallthru
      _
    // Predicated region
    $region34: #{tpu_custom_call.1} parent=1 // pred_check
      _
    $region35: #{tpu_custom_call.1} parent=1 // pred_check_branch
      %366 = sbr.rel (0) target = $region37
    $region36: #{tpu_custom_call.1} parent=1 // pred_region
      %s368 = ssub.s32 128, 128
      %369 = vsyncadd [#allocation7], %s368
      %s371 = sshll.u32 [#allocation8], 4
      %s372 = int_to_ptr.vmem [resolvable:$true] %s371
      %374 = dma.vmem_to_hbm [thread:$0]  %s372, 128, %s5, [#allocation7]
    $region37: #{tpu_custom_call.1} parent=1 // pred_fallthru
      _
    // Predicated region
    $region38: #{tpu_custom_call.1} parent=1 // pred_check
      _
    $region39: #{tpu_custom_call.1} parent=1 // pred_check_branch
      %376 = sbr.rel (0) target = $region41
    $region40: #{tpu_custom_call.1} parent=1 // pred_region
      %377 = dma.done [#allocation7], 128
    $region41: #{tpu_custom_call.1} parent=1 // pred_fallthru
      _
    %378 = vsyncpa [#allocation6], 1
    %379 = vsyncpa [#allocation7], 1

</llo_original>
